<compile_context>
chip_gen: v7x
topology: tpu7x:2x2x1
jax: 0.10.0
libtpu: 0.0.40
codegen_flags: <defaults>
</compile_context>

<pallas_src>
from functools import partial

import jax
import jax.numpy as jnp
from jax.experimental import pallas as pl
from jax.experimental.pallas import tpu as pltpu


def _round_up(x, m):
    return (x + m - 1) // m * m


def mlp_actor_kernel(eps_ref, x_ref, w1_ref, b1_ref, w2_ref, b2_ref,
                     w3_ref, b3_ref, o_ref, *, action_size):
    """Fused MLP + masked softmax + eps-mixture on one row tile.

    eps_ref : (1,1) f32 in SMEM       -- exploration lower bound
    x_ref   : (TR, I_pad) bf16        -- row tile of flattened inputs
    wN_ref  : (in_pad, out_pad) bf16, bN_ref: (1, out_pad) f32  (zero-padded, resident)
    o_ref   : (TR, A_pad) f32         -- lane-dense (128-wide) output tile
    action_size : real (unpadded) number of actions (static).
    """
    eps = eps_ref[0, 0]

    x = x_ref[...]                      # bf16 MXU operand

    # Layer 1: Linear + ReLU (padded columns of w1/b1 are zero -> exact).
    # bf16 x bf16 -> f32 accumulate on the MXU; elementwise math stays f32.
    h1 = jnp.dot(x, w1_ref[...], preferred_element_type=jnp.float32) + b1_ref[...]
    h1 = jnp.maximum(h1, 0.0)

    # Layer 2: Linear + ReLU.
    h2 = jnp.dot(h1.astype(jnp.bfloat16), w2_ref[...],
                 preferred_element_type=jnp.float32) + b2_ref[...]
    h2 = jnp.maximum(h2, 0.0)

    # Layer 3: Linear -> logits (padded to A_pad lanes), f32.
    logits = jnp.dot(h2.astype(jnp.bfloat16), w3_ref[...],
                     preferred_element_type=jnp.float32) + b3_ref[...]

    # Mask the padded action lanes so they contribute nothing to softmax.
    # NOTE: -1e30 sentinel is f32-safe; do not lower it into bf16.
    lane = jax.lax.broadcasted_iota(jnp.int32, logits.shape, 1)
    logits = jnp.where(lane < action_size, logits, -1e30)

    # Softmax over the action dimension (dim=2 of the original (B,S,A) view).
    # Exact divide (not pl.reciprocal approx) so every row sums to 1 to f32
    # precision -- the divide is one op per row and this kernel is DMA-bound.
    m = jnp.max(logits, axis=-1, keepdims=True)
    e = jnp.exp(logits - m)
    denom = jnp.sum(e, axis=-1, keepdims=True)
    softmax = e / denom

    # eps-bounded softmax for exploration. Padded lanes/rows are sliced off
    # outside; the raw (rows_p, A_pad) slab is not a valid distribution.
    inv_a = 1.0 / float(action_size)
    o_ref[...] = ((1.0 - eps) * softmax + eps * inv_a).astype(o_ref.dtype)


def mlp_actor_forward(x, eps, params, *, row_tile=1024):
    """x: (batch, seq_len, input_size) f32; eps: python/jnp scalar.

    Returns (batch, seq_len, action_size) f32.
    """
    w1, b1, w2, b2, w3, b3 = params
    batch, seq_len, input_size = x.shape
    h_size = w1.shape[1]
    action_size = w3.shape[1]

    # Lane-aligned (128) padded feature dims; zero padding keeps math exact.
    ip = _round_up(input_size, 128)
    hp = _round_up(h_size, 128)
    ap = _round_up(action_size, 128)

    # Row tiling: balance tiles to minimize padded rows, round to the bf16
    # sublane quantum (16), and keep >= 2 grid steps whenever there are enough
    # rows so the "parallel" axis can split across v7x's two TensorCores.
    rows = batch * seq_len
    sub = 16                                       # bf16 (16,128) native tile
    n_tiles = max(1, pl.cdiv(rows, row_tile))
    if n_tiles == 1 and rows > sub:
        n_tiles = 2
    tr = _round_up(pl.cdiv(rows, n_tiles), sub)
    rows_p = n_tiles * tr
    grid = (n_tiles,)

    # bf16 matmul operands (native MXU dtype on v5e/v6e/v7x, half the DMA
    # bytes); biases stay f32 and are added to the f32 accumulators.
    x2d = x.reshape(rows, input_size).astype(jnp.bfloat16)
    x2d = jnp.pad(x2d, ((0, rows_p - rows), (0, ip - input_size)))

    w1p = jnp.pad(w1.astype(jnp.bfloat16), ((0, ip - input_size), (0, hp - h_size)))
    b1p = jnp.pad(b1.astype(jnp.float32), ((0, 0), (0, hp - h_size)))
    w2p = jnp.pad(w2.astype(jnp.bfloat16), ((0, hp - h_size), (0, hp - h_size)))
    b2p = jnp.pad(b2.astype(jnp.float32), ((0, 0), (0, hp - h_size)))
    w3p = jnp.pad(w3.astype(jnp.bfloat16), ((0, hp - h_size), (0, ap - action_size)))
    b3p = jnp.pad(b3.astype(jnp.float32), ((0, 0), (0, ap - action_size)))

    eps_arr = jnp.asarray(eps, dtype=jnp.float32).reshape(1, 1)

    flops = 2 * rows_p * (ip * hp + hp * hp + hp * ap)
    bytes_accessed = (2 * (rows_p * ip + ip * hp + hp * hp + hp * ap)   # bf16
                      + 4 * (hp + hp + ap + rows_p * ap))               # f32
    cost = pl.CostEstimate(flops=flops,
                           transcendentals=rows_p * ap,
                           bytes_accessed=bytes_accessed)

    # TODO(synk): shrink the 128-lane f32 output slab (bf16 store or lane-pack
    # 16 rows x action_size into one 128-lane row) to cut the ~16x output-write
    # amplification; kept f32/lane-dense here to preserve tight sum-to-1 parity.
    out2d = pl.pallas_call(
        partial(mlp_actor_kernel, action_size=action_size),
        out_shape=jax.ShapeDtypeStruct((rows_p, ap), jnp.float32),
        grid=grid,
        in_specs=[
            pl.BlockSpec((1, 1), lambda i: (0, 0), memory_space=pltpu.SMEM),
            pl.BlockSpec((tr, ip), lambda i: (i, 0)),      # row-tiled input
            pl.BlockSpec((ip, hp), lambda i: (0, 0)),      # weights resident
            pl.BlockSpec((1, hp), lambda i: (0, 0)),
            pl.BlockSpec((hp, hp), lambda i: (0, 0)),
            pl.BlockSpec((1, hp), lambda i: (0, 0)),
            pl.BlockSpec((hp, ap), lambda i: (0, 0)),
            pl.BlockSpec((1, ap), lambda i: (0, 0)),
        ],
        out_specs=pl.BlockSpec((tr, ap), lambda i: (i, 0)),  # lane-dense store
        compiler_params=pltpu.CompilerParams(
            dimension_semantics=("parallel",),               # megacore on v7x
            vmem_limit_bytes=32 * 1024 * 1024),              # needed on v5e if tiles grow
        cost_estimate=cost,
    )(eps_arr, x2d, w1p, b1p, w2p, b2p, w3p, b3p)

    return out2d[:rows, :action_size].reshape(batch, seq_len, action_size)


def init_params(key, input_size, h_size, action_size):
    """Deterministic init mimicking nn.Linear default (uniform +/- 1/sqrt(fan_in)).

    Weights are stored already transposed to (in_features, out_features).
    """
    ks = jax.random.split(key, 6)

    def linear(kw, kb, fan_in, fan_out):
        bound = 1.0 / jnp.sqrt(jnp.float32(fan_in))
        w = jax.random.uniform(kw, (fan_in, fan_out), jnp.float32, -bound, bound)
        b = jax.random.uniform(kb, (1, fan_out), jnp.float32, -bound, bound)
        return w, b

    w1, b1 = linear(ks[0], ks[1], input_size, h_size)
    w2, b2 = linear(ks[2], ks[3], h_size, h_size)
    w3, b3 = linear(ks[4], ks[5], h_size, action_size)
    return (w1, b1, w2, b2, w3, b3)


def _reference(x, eps, params):
    w1, b1, w2, b2, w3, b3 = params
    h1 = jnp.maximum(x @ w1 + b1, 0.0)
    h2 = jnp.maximum(h1 @ w2 + b2, 0.0)
    logits = h2 @ w3 + b3
    action_size = w3.shape[1]
    return (1.0 - eps) * jax.nn.softmax(logits, axis=2) + eps / action_size


if __name__ == "__main__":
    key = jax.random.PRNGKey(0)
    input_size, h_size, action_size = 32, 32, 8
    eps = 0.1

    k_x, k_p, k_x2 = jax.random.split(key, 3)
    params = init_params(k_p, input_size, h_size, action_size)

    # Small case from the module spec: (batch=2, seq_len=8, input_size=32).
    batch, seq_len = 2, 8
    x = jax.random.normal(k_x, (batch, seq_len, input_size), jnp.float32)
    out = jax.block_until_ready(mlp_actor_forward(x, eps, params))
    ref = _reference(x, eps, params)
    assert out.shape == (batch, seq_len, action_size)
    # bf16 matmul operands (f32 accumulate) -> slightly looser tolerance vs
    # the all-f32 reference.
    assert jnp.allclose(out, ref, atol=5e-3, rtol=5e-3)
    # Exact softmax divide: rows sum to 1 to f32 precision.
    assert jnp.allclose(jnp.sum(out, axis=-1), 1.0, atol=1e-4)

    # Larger case exercising multi-tile grid + row-remainder padding
    # (rows=400 -> 2 balanced tiles of 208 rows, grid=(2,)).
    batch2, seq_len2 = 4, 100
    x2 = jax.random.normal(k_x2, (batch2, seq_len2, input_size), jnp.float32)
    out2 = jax.block_until_ready(mlp_actor_forward(x2, eps, params))
    ref2 = _reference(x2, eps, params)
    assert out2.shape == (batch2, seq_len2, action_size)
    assert jnp.allclose(out2, ref2, atol=5e-3, rtol=5e-3)
    assert jnp.allclose(jnp.sum(out2, axis=-1), 1.0, atol=1e-4)

    print("KERNEL_OK")
</pallas_src>

<mosaic_0001>
module attributes {stable_mosaic.version = 11 : i64} {
  func.func @mlp_actor_kernel(%arg0: i32, %arg1: memref<1x1xf32, #tpu.memory_space<smem>>, %arg2: memref<16x128xbf16, #tpu.memory_space<vmem>>, %arg3: memref<128x128xbf16, #tpu.memory_space<vmem>>, %arg4: memref<1x128xf32, #tpu.memory_space<vmem>>, %arg5: memref<128x128xbf16, #tpu.memory_space<vmem>>, %arg6: memref<1x128xf32, #tpu.memory_space<vmem>>, %arg7: memref<128x128xbf16, #tpu.memory_space<vmem>>, %arg8: memref<1x128xf32, #tpu.memory_space<vmem>>, %arg9: memref<16x128xf32, #tpu.memory_space<vmem>>) attributes {dimension_semantics = [#tpu.dimension_semantics<parallel>], iteration_bounds = array<i64: 1>, scalar_prefetch = 0 : i64, scratch_operands = 0 : i64, tpu.core_type = #tpu.core_type<tc>, window_params = [{transform_indices = @transform_0, window_bounds = array<i64: 1, 1>}, {transform_indices = @transform_1, window_bounds = array<i64: 16, 128>}, {pipeline_mode = #tpu.pipeline_mode<synchronous>, transform_indices = @transform_2, window_bounds = array<i64: 128, 128>}, {pipeline_mode = #tpu.pipeline_mode<synchronous>, transform_indices = @transform_3, window_bounds = array<i64: 1, 128>}, {pipeline_mode = #tpu.pipeline_mode<synchronous>, transform_indices = @transform_4, window_bounds = array<i64: 128, 128>}, {pipeline_mode = #tpu.pipeline_mode<synchronous>, transform_indices = @transform_5, window_bounds = array<i64: 1, 128>}, {pipeline_mode = #tpu.pipeline_mode<synchronous>, transform_indices = @transform_6, window_bounds = array<i64: 128, 128>}, {pipeline_mode = #tpu.pipeline_mode<synchronous>, transform_indices = @transform_7, window_bounds = array<i64: 1, 128>}, {transform_indices = @transform_8, window_bounds = array<i64: 16, 128>}]} {
    %c0 = arith.constant 0 : index
    %c0_0 = arith.constant 0 : index
    %0 = memref.load %arg1[%c0, %c0_0] : memref<1x1xf32, #tpu.memory_space<smem>>
    %c0_1 = arith.constant 0 : index
    %c0_2 = arith.constant 0 : index
    %1 = vector.load %arg2[%c0_1, %c0_2] : memref<16x128xbf16, #tpu.memory_space<vmem>>, vector<16x128xbf16>
    %c0_3 = arith.constant 0 : index
    %c0_4 = arith.constant 0 : index
    %2 = vector.load %arg3[%c0_3, %c0_4] : memref<128x128xbf16, #tpu.memory_space<vmem>>, vector<128x128xbf16>
    %cst = arith.constant dense<0.000000e+00> : vector<16x128xf32>
    %3 = tpu.matmul %1, %2, %cst {dimension_numbers = #tpu.dot_dimension_numbers<[1], [0], [0], [1], [0, 0, 1, 1], [], []>} : vector<16x128xbf16>, vector<128x128xbf16>, vector<16x128xf32> -> vector<16x128xf32>
    %c0_5 = arith.constant 0 : index
    %c0_6 = arith.constant 0 : index
    %4 = vector.load %arg4[%c0_5, %c0_6] : memref<1x128xf32, #tpu.memory_space<vmem>>, vector<1x128xf32>
    %5 = vector.broadcast %4 : vector<1x128xf32> to vector<16x128xf32>
    %6 = arith.addf %3, %5 : vector<16x128xf32>
    %cst_7 = arith.constant 0.000000e+00 : f32
    %7 = vector.broadcast %cst_7 : f32 to vector<16x128xf32>
    %8 = arith.maximumf %6, %7 : vector<16x128xf32>
    %9 = arith.truncf %8 : vector<16x128xf32> to vector<16x128xbf16>
    %c0_8 = arith.constant 0 : index
    %c0_9 = arith.constant 0 : index
    %10 = vector.load %arg5[%c0_8, %c0_9] : memref<128x128xbf16, #tpu.memory_space<vmem>>, vector<128x128xbf16>
    %cst_10 = arith.constant dense<0.000000e+00> : vector<16x128xf32>
    %11 = tpu.matmul %9, %10, %cst_10 {dimension_numbers = #tpu.dot_dimension_numbers<[1], [0], [0], [1], [0, 0, 1, 1], [], []>} : vector<16x128xbf16>, vector<128x128xbf16>, vector<16x128xf32> -> vector<16x128xf32>
    %c0_11 = arith.constant 0 : index
    %c0_12 = arith.constant 0 : index
    %12 = vector.load %arg6[%c0_11, %c0_12] : memref<1x128xf32, #tpu.memory_space<vmem>>, vector<1x128xf32>
    %13 = vector.broadcast %12 : vector<1x128xf32> to vector<16x128xf32>
    %14 = arith.addf %11, %13 : vector<16x128xf32>
    %cst_13 = arith.constant 0.000000e+00 : f32
    %15 = vector.broadcast %cst_13 : f32 to vector<16x128xf32>
    %16 = arith.maximumf %14, %15 : vector<16x128xf32>
    %17 = arith.truncf %16 : vector<16x128xf32> to vector<16x128xbf16>
    %c0_14 = arith.constant 0 : index
    %c0_15 = arith.constant 0 : index
    %18 = vector.load %arg7[%c0_14, %c0_15] : memref<128x128xbf16, #tpu.memory_space<vmem>>, vector<128x128xbf16>
    %cst_16 = arith.constant dense<0.000000e+00> : vector<16x128xf32>
    %19 = tpu.matmul %17, %18, %cst_16 {dimension_numbers = #tpu.dot_dimension_numbers<[1], [0], [0], [1], [0, 0, 1, 1], [], []>} : vector<16x128xbf16>, vector<128x128xbf16>, vector<16x128xf32> -> vector<16x128xf32>
    %c0_17 = arith.constant 0 : index
    %c0_18 = arith.constant 0 : index
    %20 = vector.load %arg8[%c0_17, %c0_18] : memref<1x128xf32, #tpu.memory_space<vmem>>, vector<1x128xf32>
    %21 = vector.broadcast %20 : vector<1x128xf32> to vector<16x128xf32>
    %22 = arith.addf %19, %21 : vector<16x128xf32>
    %23 = tpu.iota {dimensions = array<i32: 1>} : vector<16x128xi32>
    %c8_i32 = arith.constant 8 : i32
    %24 = vector.broadcast %c8_i32 : i32 to vector<16x128xi32>
    %25 = arith.cmpi slt, %23, %24 : vector<16x128xi32>
    %cst_19 = arith.constant -1.000000e+30 : f32
    %26 = vector.broadcast %cst_19 : f32 to vector<16x128xf32>
    %27 = arith.select %25, %22, %26 : vector<16x128xi1>, vector<16x128xf32>
    %cst_20 = arith.constant dense<0xFF800000> : vector<16xf32>
    %28 = vector.multi_reduction <maximumf>, %27, %cst_20 [1] : vector<16x128xf32> to vector<16xf32>
    %29 = vector.shape_cast %28 : vector<16xf32> to vector<16x1xf32>
    %30 = vector.broadcast %29 : vector<16x1xf32> to vector<16x128xf32>
    %31 = arith.subf %27, %30 : vector<16x128xf32>
    %32 = math.exp %31 : vector<16x128xf32>
    %cst_21 = arith.constant dense<0.000000e+00> : vector<16xf32>
    %33 = vector.multi_reduction <add>, %32, %cst_21 [1] : vector<16x128xf32> to vector<16xf32>
    %34 = vector.shape_cast %33 : vector<16xf32> to vector<16x1xf32>
    %35 = vector.broadcast %34 : vector<16x1xf32> to vector<16x128xf32>
    %36 = arith.divf %32, %35 : vector<16x128xf32>
    %cst_22 = arith.constant 1.000000e+00 : f32
    %37 = arith.subf %cst_22, %0 : f32
    %38 = vector.broadcast %37 : f32 to vector<16x128xf32>
    %39 = arith.mulf %38, %36 : vector<16x128xf32>
    %cst_23 = arith.constant 1.250000e-01 : f32
    %40 = arith.mulf %0, %cst_23 : f32
    %41 = vector.broadcast %40 : f32 to vector<16x128xf32>
    %42 = arith.addf %39, %41 : vector<16x128xf32>
    %c0_24 = arith.constant 0 : index
    %c0_25 = arith.constant 0 : index
    %43 = vector.load %arg9[%c0_24, %c0_25] : memref<16x128xf32, #tpu.memory_space<vmem>>, vector<16x128xf32>
    tpu.vector_store %arg9[%c0_24, %c0_25], %42 {strides = array<i32>} : memref<16x128xf32, #tpu.memory_space<vmem>>, vector<16x128xf32>,
    return
  }
  func.func @transform_0(%arg0: i32) -> (i32, i32) {
    %c0_i32 = arith.constant 0 : i32
    %c0_i32_0 = arith.constant 0 : i32
    %c0_i32_1 = arith.constant 0 : i32
    return %c0_i32, %c0_i32_0 : i32, i32
  }
  func.func @transform_1(%arg0: i32) -> (i32, i32) {
    %c0_i32 = arith.constant 0 : i32
    %c0_i32_0 = arith.constant 0 : i32
    return %arg0, %c0_i32 : i32, i32
  }
  func.func @transform_2(%arg0: i32) -> (i32, i32) {
    %c0_i32 = arith.constant 0 : i32
    %c0_i32_0 = arith.constant 0 : i32
    %c0_i32_1 = arith.constant 0 : i32
    return %c0_i32, %c0_i32_0 : i32, i32
  }
  func.func @transform_3(%arg0: i32) -> (i32, i32) {
    %c0_i32 = arith.constant 0 : i32
    %c0_i32_0 = arith.constant 0 : i32
    %c0_i32_1 = arith.constant 0 : i32
    return %c0_i32, %c0_i32_0 : i32, i32
  }
  func.func @transform_4(%arg0: i32) -> (i32, i32) {
    %c0_i32 = arith.constant 0 : i32
    %c0_i32_0 = arith.constant 0 : i32
    %c0_i32_1 = arith.constant 0 : i32
    return %c0_i32, %c0_i32_0 : i32, i32
  }
  func.func @transform_5(%arg0: i32) -> (i32, i32) {
    %c0_i32 = arith.constant 0 : i32
    %c0_i32_0 = arith.constant 0 : i32
    %c0_i32_1 = arith.constant 0 : i32
    return %c0_i32, %c0_i32_0 : i32, i32
  }
  func.func @transform_6(%arg0: i32) -> (i32, i32) {
    %c0_i32 = arith.constant 0 : i32
    %c0_i32_0 = arith.constant 0 : i32
    %c0_i32_1 = arith.constant 0 : i32
    return %c0_i32, %c0_i32_0 : i32, i32
  }
  func.func @transform_7(%arg0: i32) -> (i32, i32) {
    %c0_i32 = arith.constant 0 : i32
    %c0_i32_0 = arith.constant 0 : i32
    %c0_i32_1 = arith.constant 0 : i32
    return %c0_i32, %c0_i32_0 : i32, i32
  }
  func.func @transform_8(%arg0: i32) -> (i32, i32) {
    %c0_i32 = arith.constant 0 : i32
    %c0_i32_0 = arith.constant 0 : i32
    return %arg0, %c0_i32 : i32, i32
  }
}

</mosaic_0001>

<llo_original>
// kernel: tpu_custom_call.1
$region0: #{tpu_custom_call.1}
  #allocation0 [shape = 'u32[]', space=smem, size = 0x4, offset = 0x4, fixed_abs, tag = 'smem constant byte address 0x4 - core index']
  #allocation1 [shape = 'u32[144,128]{1,0:T(1,128)}', space=vmem, size = 0x12000, scoped, tag = 'internal scratch']
  #allocation2 [shape = 'f32[1,1]{1,0:T(1,128)S(6)}', space=smem, size = 0x200, scoped, tag = 'scoped memory for tpu_custom_call.1']
  %s0 = inlined_call_operand.<no memory space> [shape: f32[1,1], index: 0, kind: input, shape index: {}]
  %s1 = inlined_call_operand.hbm [shape: bf16[16,128], index: 1, kind: input, shape index: {}]
  %s2 = inlined_call_operand.hbm [shape: bf16[128,128], index: 2, kind: input, shape index: {}]
  %s3 = inlined_call_operand.vmem [shape: f32[1,128], index: 3, kind: input, shape index: {}]
  %s4 = inlined_call_operand.hbm [shape: bf16[128,128], index: 4, kind: input, shape index: {}]
  %s5 = inlined_call_operand.vmem [shape: f32[1,128], index: 5, kind: input, shape index: {}]
  %s6 = inlined_call_operand.hbm [shape: bf16[128,128], index: 6, kind: input, shape index: {}]
  %s7 = inlined_call_operand.vmem [shape: f32[1,128], index: 7, kind: input, shape index: {}]
  %s8 = inlined_call_operand.hbm [shape: f32[16,128], index: 8, kind: output, shape index: {}]
  %s9 = sld [smem:[#allocation0]]
  $region58: #{tpu_custom_call.1} parent=0
    _
  %s11 = ssub.s32 1, %s9
  %s12 = scalar_select 0, %s11, %s9
  %13 = sst [smem:[#allocation2]] %s0
  $region1: #{tpu_custom_call.1} parent=0
    #allocation3 [shape = 'u8[4096]{0}', space=vmem, size = 0x1000, scoped, tag = 'input window, operand 1, single buffered']
    #allocation4 [shape = 's32[1]{0}', space=sflag, size = 0x4, scoped, tag = 'scoped memory for tpu_custom_call.1']
    #allocation5 [shape = 's32[1]{0}', space=sflag, size = 0x4, scoped, tag = 'scoped memory for tpu_custom_call.1']
    #allocation6 [shape = 'u8[32768]{0}', space=vmem, size = 0x8000, scoped, tag = 'input window, operand 2, single buffered']
    #allocation7 [shape = 's32[1]{0}', space=sflag, size = 0x4, scoped, tag = 'scoped memory for tpu_custom_call.1']
    #allocation8 [shape = 'u8[32768]{0}', space=vmem, size = 0x8000, scoped, tag = 'input window, operand 4, single buffered']
    #allocation9 [shape = 'u8[32768]{0}', space=vmem, size = 0x8000, scoped, tag = 'input window, operand 6, single buffered']
    #allocation10 [shape = 's32[1]{0}', space=sflag, size = 0x4, scoped, tag = 'scoped memory for tpu_custom_call.1']
    #allocation11 [shape = 'u8[8192]{0}', space=vmem, size = 0x2000, scoped, tag = 'output window, operand 0, single buffered']
    %14 = vsyncpa [#allocation4], 0
    %15 = vsyncpa [#allocation7], 0
    %16 = vsyncpa [#allocation10], 0
    %17 = vsyncpa [#allocation5], 0
    // Predicated region
    $region2: #{tpu_custom_call.1} parent=1 // pred_check
      _
    $region3: #{tpu_custom_call.1} parent=1 // pred_check_branch
      %19 = sbr.rel (0) target = $region5
    $region4: #{tpu_custom_call.1} parent=1 // pred_region
      _
    $region5: #{tpu_custom_call.1} parent=1 // pred_fallthru
      _
    // Predicated region
    $region6: #{tpu_custom_call.1} parent=1 // pred_check
      _
    $region7: #{tpu_custom_call.1} parent=1 // pred_check_branch
      %21 = sbr.rel (0) target = $region9
    $region8: #{tpu_custom_call.1} parent=1 // pred_region
      %s23 = ssub.s32 128, 128
      %24 = vsyncadd [#allocation4], %s23
      %s25 = sshll.u32 [#allocation3], 4
      %s26 = int_to_ptr.vmem [resolvable:$true] %s25
      %31 = dma.hbm_to_vmem [thread:$0]  %s1, 128, %s26, [#allocation4], 64, 64, 4
    $region9: #{tpu_custom_call.1} parent=1 // pred_fallthru
      _
    // Predicated region
    $region10: #{tpu_custom_call.1} parent=1 // pred_check
      _
    $region11: #{tpu_custom_call.1} parent=1 // pred_check_branch
      %33 = sbr.rel (0) target = $region13
    $region12: #{tpu_custom_call.1} parent=1 // pred_region
      %s35 = ssub.s32 1024, 1024
      %36 = vsyncadd [#allocation7], %s35
      %s37 = sshll.u32 [#allocation6], 4
      %s38 = int_to_ptr.vmem [resolvable:$true] %s37
      %43 = dma.hbm_to_vmem [thread:$0]  %s2, 1024, %s38, [#allocation7], 64, 64, 4
    $region13: #{tpu_custom_call.1} parent=1 // pred_fallthru
      _
    // Predicated region
    $region14: #{tpu_custom_call.1} parent=1 // pred_check
      _
    $region15: #{tpu_custom_call.1} parent=1 // pred_check_branch
      %45 = sbr.rel (0) target = $region17
    $region16: #{tpu_custom_call.1} parent=1 // pred_region
      _
    $region17: #{tpu_custom_call.1} parent=1 // pred_fallthru
      _
    // Predicated region
    $region18: #{tpu_custom_call.1} parent=1 // pred_check
      _
    $region19: #{tpu_custom_call.1} parent=1 // pred_check_branch
      %47 = sbr.rel (0) target = $region21
    $region20: #{tpu_custom_call.1} parent=1 // pred_region
      %s49 = ssub.s32 1024, 1024
      %50 = vsyncadd [#allocation7], %s49
      %s51 = sshll.u32 [#allocation8], 4
      %s52 = int_to_ptr.vmem [resolvable:$true] %s51
      %57 = dma.hbm_to_vmem [thread:$0]  %s4, 1024, %s52, [#allocation7], 64, 64, 4
    $region21: #{tpu_custom_call.1} parent=1 // pred_fallthru
      _
    // Predicated region
    $region22: #{tpu_custom_call.1} parent=1 // pred_check
      _
    $region23: #{tpu_custom_call.1} parent=1 // pred_check_branch
      %59 = sbr.rel (0) target = $region25
    $region24: #{tpu_custom_call.1} parent=1 // pred_region
      _
    $region25: #{tpu_custom_call.1} parent=1 // pred_fallthru
      _
    // Predicated region
    $region26: #{tpu_custom_call.1} parent=1 // pred_check
      _
    $region27: #{tpu_custom_call.1} parent=1 // pred_check_branch
      %61 = sbr.rel (0) target = $region29
    $region28: #{tpu_custom_call.1} parent=1 // pred_region
      %s63 = ssub.s32 1024, 1024
      %64 = vsyncadd [#allocation10], %s63
      %s65 = sshll.u32 [#allocation9], 4
      %s66 = int_to_ptr.vmem [resolvable:$true] %s65
      %71 = dma.hbm_to_vmem [thread:$0]  %s6, 1024, %s66, [#allocation10], 64, 64, 4
    $region29: #{tpu_custom_call.1} parent=1 // pred_fallthru
      _
    // Predicated region
    $region30: #{tpu_custom_call.1} parent=1 // pred_check
      _
    $region31: #{tpu_custom_call.1} parent=1 // pred_check_branch
      %73 = sbr.rel (0) target = $region33
    $region32: #{tpu_custom_call.1} parent=1 // pred_region
      _
    $region33: #{tpu_custom_call.1} parent=1 // pred_fallthru
      _
    // Predicated region
    $region34: #{tpu_custom_call.1} parent=1 // pred_check
      _
    $region35: #{tpu_custom_call.1} parent=1 // pred_check_branch
      %75 = sbr.rel (0) target = $region37
    $region36: #{tpu_custom_call.1} parent=1 // pred_region
      %76 = dma.done [#allocation4], 128
    $region37: #{tpu_custom_call.1} parent=1 // pred_fallthru
      _
    // Predicated region
    $region38: #{tpu_custom_call.1} parent=1 // pred_check
      _
    $region39: #{tpu_custom_call.1} parent=1 // pred_check_branch
      %78 = sbr.rel (0) target = $region41
    $region40: #{tpu_custom_call.1} parent=1 // pred_region
      %79 = dma.done [#allocation7], 1024
    $region41: #{tpu_custom_call.1} parent=1 // pred_fallthru
      _
    // Predicated region
    $region42: #{tpu_custom_call.1} parent=1 // pred_check
      _
    $region43: #{tpu_custom_call.1} parent=1 // pred_check_branch
      %81 = sbr.rel (0) target = $region45
    $region44: #{tpu_custom_call.1} parent=1 // pred_region
      %82 = dma.done [#allocation7], 1024
    $region45: #{tpu_custom_call.1} parent=1 // pred_fallthru
      _
    // Predicated region
    $region46: #{tpu_custom_call.1} parent=1 // pred_check
      _
    $region47: #{tpu_custom_call.1} parent=1 // pred_check_branch
      %84 = sbr.rel (0) target = $region49
    $region48: #{tpu_custom_call.1} parent=1 // pred_region
      %85 = dma.done [#allocation10], 1024
    $region49: #{tpu_custom_call.1} parent=1 // pred_fallthru
      _
    %s87 = sld [smem:[#allocation2]]
    %v88 = vld [vmem:[#allocation3] sm:$0xf]
    %v89 = vld [vmem:[#allocation3 + $0x4] sm:$0xf]
    %v90 = vld [vmem:[#allocation6] sm:$0xf]
    %v91 = vld [vmem:[#allocation6 + $0x4] sm:$0xf]
    %v92 = vld [vmem:[#allocation6 + $0x8] sm:$0xf]
    %v93 = vld [vmem:[#allocation6 + $0xc] sm:$0xf]
    %v94 = vld [vmem:[#allocation6 + $0x10] sm:$0xf]
    %v95 = vld [vmem:[#allocation6 + $0x14] sm:$0xf]
    %v96 = vld [vmem:[#allocation6 + $0x18] sm:$0xf]
    %v97 = vld [vmem:[#allocation6 + $0x1c] sm:$0xf]
    %v98 = vld [vmem:[#allocation6 + $0x20] sm:$0xf]
    %v99 = vld [vmem:[#allocation6 + $0x24] sm:$0xf]
    %v100 = vld [vmem:[#allocation6 + $0x28] sm:$0xf]
    %v101 = vld [vmem:[#allocation6 + $0x2c] sm:$0xf]
    %v102 = vld [vmem:[#allocation6 + $0x30] sm:$0xf]
    %v103 = vld [vmem:[#allocation6 + $0x34] sm:$0xf]
    %v104 = vld [vmem:[#allocation6 + $0x38] sm:$0xf]
    %v105 = vld [vmem:[#allocation6 + $0x3c] sm:$0xf]
    %v106 = vld [vmem:[%s3] sm:$0x1]
    %v108 = vlaneseq
    %v109 = vshrl.u32 %v108, 7
    %v110 = vsub.s32 0, %v109
    %v111 = vrot.slane %v106, %v110
    %v115 = vunpack.c.l.b16 %v88
    %v116 = vunpack.c.l.b16 %v89
    %v117 = vpack.c.b16 %v116, %v115
    %v135 = vunpack.c.l.b16 %v90
    %v136 = vunpack.c.l.b16 %v91
    %v137 = vunpack.c.l.b16 %v92
    %v138 = vunpack.c.l.b16 %v93
    %v139 = vunpack.c.l.b16 %v94
    %v140 = vunpack.c.l.b16 %v95
    %v141 = vunpack.c.l.b16 %v96
    %v142 = vunpack.c.l.b16 %v97
    %v143 = vunpack.c.l.b16 %v98
    %v144 = vunpack.c.l.b16 %v99
    %v145 = vunpack.c.l.b16 %v100
    %v146 = vunpack.c.l.b16 %v101
    %v147 = vunpack.c.l.b16 %v102
    %v148 = vunpack.c.l.b16 %v103
    %v149 = vunpack.c.l.b16 %v104
    %v150 = vunpack.c.l.b16 %v105
    %v151 = vpack.c.b16 %v136, %v135
    %v152 = vpack.c.b16 %v138, %v137
    %v153 = vpack.c.b16 %v140, %v139
    %v154 = vpack.c.b16 %v142, %v141
    %v155 = vpack.c.b16 %v144, %v143
    %v156 = vpack.c.b16 %v146, %v145
    %v157 = vpack.c.b16 %v148, %v147
    %v158 = vpack.c.b16 %v150, %v149
    %167 = vmatprep.subr.bf16.mxu0 0
    %168 = vmatpush1.bf16.msra.mxu0 %v151
    %169 = vmatprep.subr.bf16.mxu0 0
    %170 = vmatpush1.bf16.msra.mxu0 %v152
    %171 = vmatprep.subr.bf16.mxu0 0
    %172 = vmatpush1.bf16.msra.mxu0 %v153
    %173 = vmatprep.subr.bf16.mxu0 0
    %174 = vmatpush1.bf16.msra.mxu0 %v154
    %175 = vmatprep.subr.bf16.mxu0 0
    %176 = vmatpush1.bf16.msra.mxu0 %v155
    %177 = vmatprep.subr.bf16.mxu0 0
    %178 = vmatpush1.bf16.msra.mxu0 %v156
    %179 = vmatprep.subr.bf16.mxu0 0
    %180 = vmatpush1.bf16.msra.mxu0 %v157
    %181 = vmatprep.subr.bf16.mxu0 0
    %182 = vmatpush1.bf16.msra.mxu0 %v158
    %183 = vmatprep.subr.bf16.mxu0 0
    %184 = vmatpush1.bf16.msra.mxu0 0
    %185 = vmatprep.subr.bf16.mxu0 0
    %186 = vmatpush1.bf16.msra.mxu0 0
    %187 = vmatprep.subr.bf16.mxu0 0
    %188 = vmatpush1.bf16.msra.mxu0 0
    %189 = vmatprep.subr.bf16.mxu0 0
    %190 = vmatpush1.bf16.msra.mxu0 0
    %191 = vmatprep.subr.bf16.mxu0 0
    %192 = vmatpush1.bf16.msra.mxu0 0
    %193 = vmatprep.subr.bf16.mxu0 0
    %194 = vmatpush1.bf16.msra.mxu0 0
    %195 = vmatprep.subr.bf16.mxu0 0
    %196 = vmatpush1.bf16.msra.mxu0 0
    %197 = vmatprep.subr.bf16.mxu0 0
    %198 = vmatpush1.bf16.msra.mxu0 0
    %199 = vmatprep.mubr.bf16.mxu0 0
    %200 = vmatmul.mubr.bf16.gmra.mrb[0].mxu0 %v117
    %v201 = vpop.f32.mrb[0].mxu0
    %v202 = vadd.f32 %v111, %v201
    %v203 = vpop.f32.mrb[0].mxu0
    %v204 = vpop.f32.mrb[0].mxu0
    %v205 = vadd.f32 %v111, %v204
    %v206 = vpop.f32.mrb[0].mxu0
    %207 = vdwg.mxu0
    %v208 = vmax.f32 %v202, 0.0
    %v209 = vmax.f32 %v205, 0.0
    %v210 = vpack.c.bf16 %v209, %v208
    %v211 = vld [vmem:[#allocation8] sm:$0xf]
    %v212 = vld [vmem:[#allocation8 + $0x4] sm:$0xf]
    %v213 = vld [vmem:[#allocation8 + $0x8] sm:$0xf]
    %v214 = vld [vmem:[#allocation8 + $0xc] sm:$0xf]
    %v215 = vld [vmem:[#allocation8 + $0x10] sm:$0xf]
    %v216 = vld [vmem:[#allocation8 + $0x14] sm:$0xf]
    %v217 = vld [vmem:[#allocation8 + $0x18] sm:$0xf]
    %v218 = vld [vmem:[#allocation8 + $0x1c] sm:$0xf]
    %v219 = vld [vmem:[#allocation8 + $0x20] sm:$0xf]
    %v220 = vld [vmem:[#allocation8 + $0x24] sm:$0xf]
    %v221 = vld [vmem:[#allocation8 + $0x28] sm:$0xf]
    %v222 = vld [vmem:[#allocation8 + $0x2c] sm:$0xf]
    %v223 = vld [vmem:[#allocation8 + $0x30] sm:$0xf]
    %v224 = vld [vmem:[#allocation8 + $0x34] sm:$0xf]
    %v225 = vld [vmem:[#allocation8 + $0x38] sm:$0xf]
    %v226 = vld [vmem:[#allocation8 + $0x3c] sm:$0xf]
    %v227 = vld [vmem:[%s5] sm:$0x1]
    %v229 = vlaneseq
    %v230 = vshrl.u32 %v229, 7
    %v231 = vsub.s32 0, %v230
    %v232 = vrot.slane %v227, %v231
    %v250 = vunpack.c.l.b16 %v211
    %v251 = vunpack.c.l.b16 %v212
    %v252 = vunpack.c.l.b16 %v213
    %v253 = vunpack.c.l.b16 %v214
    %v254 = vunpack.c.l.b16 %v215
    %v255 = vunpack.c.l.b16 %v216
    %v256 = vunpack.c.l.b16 %v217
    %v257 = vunpack.c.l.b16 %v218
    %v258 = vunpack.c.l.b16 %v219
    %v259 = vunpack.c.l.b16 %v220
    %v260 = vunpack.c.l.b16 %v221
    %v261 = vunpack.c.l.b16 %v222
    %v262 = vunpack.c.l.b16 %v223
    %v263 = vunpack.c.l.b16 %v224
    %v264 = vunpack.c.l.b16 %v225
    %v265 = vunpack.c.l.b16 %v226
    %v266 = vpack.c.b16 %v251, %v250
    %v267 = vpack.c.b16 %v253, %v252
    %v268 = vpack.c.b16 %v255, %v254
    %v269 = vpack.c.b16 %v257, %v256
    %v270 = vpack.c.b16 %v259, %v258
    %v271 = vpack.c.b16 %v261, %v260
    %v272 = vpack.c.b16 %v263, %v262
    %v273 = vpack.c.b16 %v265, %v264
    %282 = vmatprep.subr.bf16.mxu0 0
    %283 = vmatpush1.bf16.msra.mxu0 %v266
    %284 = vmatprep.subr.bf16.mxu0 0
    %285 = vmatpush1.bf16.msra.mxu0 %v267
    %286 = vmatprep.subr.bf16.mxu0 0
    %287 = vmatpush1.bf16.msra.mxu0 %v268
    %288 = vmatprep.subr.bf16.mxu0 0
    %289 = vmatpush1.bf16.msra.mxu0 %v269
    %290 = vmatprep.subr.bf16.mxu0 0
    %291 = vmatpush1.bf16.msra.mxu0 %v270
    %292 = vmatprep.subr.bf16.mxu0 0
    %293 = vmatpush1.bf16.msra.mxu0 %v271
    %294 = vmatprep.subr.bf16.mxu0 0
    %295 = vmatpush1.bf16.msra.mxu0 %v272
    %296 = vmatprep.subr.bf16.mxu0 0
    %297 = vmatpush1.bf16.msra.mxu0 %v273
    %298 = vmatprep.subr.bf16.mxu0 0
    %299 = vmatpush1.bf16.msra.mxu0 0
    %300 = vmatprep.subr.bf16.mxu0 0
    %301 = vmatpush1.bf16.msra.mxu0 0
    %302 = vmatprep.subr.bf16.mxu0 0
    %303 = vmatpush1.bf16.msra.mxu0 0
    %304 = vmatprep.subr.bf16.mxu0 0
    %305 = vmatpush1.bf16.msra.mxu0 0
    %306 = vmatprep.subr.bf16.mxu0 0
    %307 = vmatpush1.bf16.msra.mxu0 0
    %308 = vmatprep.subr.bf16.mxu0 0
    %309 = vmatpush1.bf16.msra.mxu0 0
    %310 = vmatprep.subr.bf16.mxu0 0
    %311 = vmatpush1.bf16.msra.mxu0 0
    %312 = vmatprep.subr.bf16.mxu0 0
    %313 = vmatpush1.bf16.msra.mxu0 0
    %314 = vmatprep.mubr.bf16.mxu0 0
    %315 = vmatmul.mubr.bf16.gmra.mrb[0].mxu0 %v210
    %v316 = vpop.f32.mrb[0].mxu0
    %v317 = vadd.f32 %v232, %v316
    %v318 = vpop.f32.mrb[0].mxu0
    %v319 = vpop.f32.mrb[0].mxu0
    %v320 = vadd.f32 %v232, %v319
    %v321 = vpop.f32.mrb[0].mxu0
    %322 = vdwg.mxu0
    %v323 = vmax.f32 %v317, 0.0
    %v324 = vmax.f32 %v320, 0.0
    %v325 = vpack.c.bf16 %v324, %v323
    %v326 = vld [vmem:[#allocation9] sm:$0xf]
    %v327 = vld [vmem:[#allocation9 + $0x4] sm:$0xf]
    %v328 = vld [vmem:[#allocation9 + $0x8] sm:$0xf]
    %v329 = vld [vmem:[#allocation9 + $0xc] sm:$0xf]
    %v330 = vld [vmem:[#allocation9 + $0x10] sm:$0xf]
    %v331 = vld [vmem:[#allocation9 + $0x14] sm:$0xf]
    %v332 = vld [vmem:[#allocation9 + $0x18] sm:$0xf]
    %v333 = vld [vmem:[#allocation9 + $0x1c] sm:$0xf]
    %v334 = vld [vmem:[#allocation9 + $0x20] sm:$0xf]
    %v335 = vld [vmem:[#allocation9 + $0x24] sm:$0xf]
    %v336 = vld [vmem:[#allocation9 + $0x28] sm:$0xf]
    %v337 = vld [vmem:[#allocation9 + $0x2c] sm:$0xf]
    %v338 = vld [vmem:[#allocation9 + $0x30] sm:$0xf]
    %v339 = vld [vmem:[#allocation9 + $0x34] sm:$0xf]
    %v340 = vld [vmem:[#allocation9 + $0x38] sm:$0xf]
    %v341 = vld [vmem:[#allocation9 + $0x3c] sm:$0xf]
    %v342 = vld [vmem:[%s7] sm:$0x1]
    %v344 = vlaneseq
    %v345 = vshrl.u32 %v344, 7
    %v346 = vsub.s32 0, %v345
    %v347 = vrot.slane %v342, %v346
    %v365 = vunpack.c.l.b16 %v326
    %v366 = vunpack.c.l.b16 %v327
    %v367 = vunpack.c.l.b16 %v328
    %v368 = vunpack.c.l.b16 %v329
    %v369 = vunpack.c.l.b16 %v330
    %v370 = vunpack.c.l.b16 %v331
    %v371 = vunpack.c.l.b16 %v332
    %v372 = vunpack.c.l.b16 %v333
    %v373 = vunpack.c.l.b16 %v334
    %v374 = vunpack.c.l.b16 %v335
    %v375 = vunpack.c.l.b16 %v336
    %v376 = vunpack.c.l.b16 %v337
    %v377 = vunpack.c.l.b16 %v338
    %v378 = vunpack.c.l.b16 %v339
    %v379 = vunpack.c.l.b16 %v340
    %v380 = vunpack.c.l.b16 %v341
    %v381 = vpack.c.b16 %v366, %v365
    %v382 = vpack.c.b16 %v368, %v367
    %v383 = vpack.c.b16 %v370, %v369
    %v384 = vpack.c.b16 %v372, %v371
    %v385 = vpack.c.b16 %v374, %v373
    %v386 = vpack.c.b16 %v376, %v375
    %v387 = vpack.c.b16 %v378, %v377
    %v388 = vpack.c.b16 %v380, %v379
    %397 = vmatprep.subr.bf16.mxu0 0
    %398 = vmatpush1.bf16.msra.mxu0 %v381
    %399 = vmatprep.subr.bf16.mxu0 0
    %400 = vmatpush1.bf16.msra.mxu0 %v382
    %401 = vmatprep.subr.bf16.mxu0 0
    %402 = vmatpush1.bf16.msra.mxu0 %v383
    %403 = vmatprep.subr.bf16.mxu0 0
    %404 = vmatpush1.bf16.msra.mxu0 %v384
    %405 = vmatprep.subr.bf16.mxu0 0
    %406 = vmatpush1.bf16.msra.mxu0 %v385
    %407 = vmatprep.subr.bf16.mxu0 0
    %408 = vmatpush1.bf16.msra.mxu0 %v386
    %409 = vmatprep.subr.bf16.mxu0 0
    %410 = vmatpush1.bf16.msra.mxu0 %v387
    %411 = vmatprep.subr.bf16.mxu0 0
    %412 = vmatpush1.bf16.msra.mxu0 %v388
    %413 = vmatprep.subr.bf16.mxu0 0
    %414 = vmatpush1.bf16.msra.mxu0 0
    %415 = vmatprep.subr.bf16.mxu0 0
    %416 = vmatpush1.bf16.msra.mxu0 0
    %417 = vmatprep.subr.bf16.mxu0 0
    %418 = vmatpush1.bf16.msra.mxu0 0
    %419 = vmatprep.subr.bf16.mxu0 0
    %420 = vmatpush1.bf16.msra.mxu0 0
    %421 = vmatprep.subr.bf16.mxu0 0
    %422 = vmatpush1.bf16.msra.mxu0 0
    %423 = vmatprep.subr.bf16.mxu0 0
    %424 = vmatpush1.bf16.msra.mxu0 0
    %425 = vmatprep.subr.bf16.mxu0 0
    %426 = vmatpush1.bf16.msra.mxu0 0
    %427 = vmatprep.subr.bf16.mxu0 0
    %428 = vmatpush1.bf16.msra.mxu0 0
    %429 = vmatprep.mubr.bf16.mxu0 0
    %430 = vmatmul.mubr.bf16.gmra.mrb[0].mxu0 %v325
    %v431 = vpop.f32.mrb[0].mxu0
    %v432 = vadd.f32 %v347, %v431
    %v433 = vpop.f32.mrb[0].mxu0
    %v434 = vpop.f32.mrb[0].mxu0
    %v435 = vadd.f32 %v347, %v434
    %v436 = vpop.f32.mrb[0].mxu0
    %437 = vdwg.mxu0
    %v438 = vlaneseq
    %v439 = vand.u32 %v438, 127
    %vm440 = vcmp.lt.s32.totalorder %v439, 8
    %v441 = vsel %vm440, %v432, -1e+30
    %v442 = vsel %vm440, %v435, -1e+30
    %443 = vmax.xlane.f32.xlu0 %v441
    %v444 = vpop.xlane.xlu0 %443
    %445 = vmax.xlane.f32.xlu0 %v442
    %v446 = vpop.xlane.xlu0 %445
    %v447 = vsub.f32 %v441, %v444
    %v448 = vsub.f32 %v442, %v446
    %v449 = vmul.f32 %v447, 1.442695
    %v450 = vpow.pop %v449
    %v451 = vmul.f32 %v448, 1.442695
    %v452 = vpow.pop %v451
    %453 = vadd.xlane.f32.xlu0 %v450
    %v454 = vpop.xlane.xlu0 %453
    %455 = vadd.xlane.f32.xlu0 %v452
    %v456 = vpop.xlane.xlu0 %455
    %v457 = vrcp.pop %v454
    %v458 = vmul.f32 %v450, %v457
    %v459 = vrcp.pop %v456
    %v460 = vmul.f32 %v452, %v459
    %s461 = ssub.f32 1.0, %s87
    %v462 = vstv %s461
    %v463 = vmul.f32 %v462, %v458
    %v464 = vmul.f32 %v462, %v460
    %s465 = smul.f32 %s87, 0.125
    %v466 = vstv %s465
    %v467 = vadd.f32 %v463, %v466
    %v468 = vadd.f32 %v464, %v466
    %469 = vst [vmem:[#allocation11] sm:$0xff] %v467
    %470 = vst [vmem:[#allocation11 + $0x8] sm:$0xff] %v468
    // Predicated region
    $region50: #{tpu_custom_call.1} parent=1 // pred_check
      _
    $region51: #{tpu_custom_call.1} parent=1 // pred_check_branch
      %472 = sbr.rel (0) target = $region53
    $region52: #{tpu_custom_call.1} parent=1 // pred_region
      %s474 = ssub.s32 256, 256
      %475 = vsyncadd [#allocation5], %s474
      %s476 = sshll.u32 [#allocation11], 4
      %s477 = int_to_ptr.vmem [resolvable:$true] %s476
      %482 = dma.vmem_to_hbm [thread:$0]  %s477, 256, %s8, [#allocation5], 128, 128, 8
    $region53: #{tpu_custom_call.1} parent=1 // pred_fallthru
      _
    // Predicated region
    $region54: #{tpu_custom_call.1} parent=1 // pred_check
      _
    $region55: #{tpu_custom_call.1} parent=1 // pred_check_branch
      %484 = sbr.rel (0) target = $region57
    $region56: #{tpu_custom_call.1} parent=1 // pred_region
      %485 = dma.done [#allocation5], 256
    $region57: #{tpu_custom_call.1} parent=1 // pred_fallthru
      _
    %486 = vsyncpa [#allocation4], 1
    %487 = vsyncpa [#allocation7], 1
    %488 = vsyncpa [#allocation10], 1
    %489 = vsyncpa [#allocation5], 1

</llo_original>
